<compile_context>
chip_gen: v6e
topology: v6e:2x2x1
jax: 0.10.0
libtpu: 0.0.40
codegen_flags: <defaults>
</compile_context>

<pallas_src>
import jax
import jax.numpy as jnp
from jax import lax
from jax.experimental import pallas as pl
from jax.experimental.pallas import tpu as pltpu

EPS = 1e-5  # PyTorch BatchNorm2d default


# ----------------------------- Pallas kernels ------------------------------

def _make_conv1_branch_kernel(D):
    """Fused conv1 + branch conv as one matmul; BN (batch stats) + ReLU on
    the first D output rows (conv1), pass-through for the last D rows."""

    def kernel(xcol_ref, w_ref, b_ref, g_ref, be_ref, h1_ref, br_ref):
        # (2D, 9*Cin) @ (9*Cin, M) -> (2D, M), lane-dense.
        y = jnp.dot(w_ref[...], xcol_ref[...],
                    preferred_element_type=jnp.float32)
        y = y + b_ref[...]                       # (2D, 1) broadcast over lanes

        pre = y[:D, :]                           # conv1 pre-BN   (D, M)
        br = y[D:, :]                            # branch conv    (D, M)

        # training-mode BN: biased batch stats over (N, H, W) per channel
        mean = jnp.mean(pre, axis=1, keepdims=True)
        var = jnp.mean(jnp.square(pre - mean), axis=1, keepdims=True)
        h1 = (pre - mean) * lax.rsqrt(var + EPS) * g_ref[...] + be_ref[...]

        h1_ref[...] = jnp.maximum(h1, 0.0)
        br_ref[...] = br

    return kernel


def _make_conv2_bn_add_pool_kernel(Mp):
    """conv2 (one matmul) + BN + ReLU + residual add + 2x2 maxpool.
    Columns are pool-phase-major: 4 blocks of Mp lanes; pooling is an
    elementwise max over the four 128-aligned blocks."""

    def kernel(hcol_ref, w_ref, b_ref, g_ref, be_ref, br_ref, o_ref):
        y = jnp.dot(w_ref[...], hcol_ref[...],
                    preferred_element_type=jnp.float32)
        y = y + b_ref[...]

        mean = jnp.mean(y, axis=1, keepdims=True)
        var = jnp.mean(jnp.square(y - mean), axis=1, keepdims=True)
        h2 = (y - mean) * lax.rsqrt(var + EPS) * g_ref[...] + be_ref[...]
        h2 = jnp.maximum(h2, 0.0)

        s = h2 + br_ref[...]                     # residual add, (D, 4*Mp)

        # 2x2 maxpool = max over the 4 phase blocks (static 128-aligned slices)
        p01 = jnp.maximum(s[:, 0 * Mp:1 * Mp], s[:, 1 * Mp:2 * Mp])
        p23 = jnp.maximum(s[:, 2 * Mp:3 * Mp], s[:, 3 * Mp:4 * Mp])
        o_ref[...] = jnp.maximum(p01, p23)       # (D, Mp), lane-dense

    return kernel


def conv1_branch_pallas(xcol, wcat, bcat, g1, be1, D):
    KC, M = xcol.shape
    D2 = wcat.shape[0]
    return pl.pallas_call(
        _make_conv1_branch_kernel(D),
        out_shape=(jax.ShapeDtypeStruct((D, M), jnp.float32),
                   jax.ShapeDtypeStruct((D, M), jnp.float32)),
        grid=(1,),
        in_specs=[pl.BlockSpec((KC, M), lambda i: (0, 0)),
                  pl.BlockSpec((D2, KC), lambda i: (0, 0)),
                  pl.BlockSpec((D2, 1), lambda i: (0, 0)),
                  pl.BlockSpec((D, 1), lambda i: (0, 0)),
                  pl.BlockSpec((D, 1), lambda i: (0, 0))],
        out_specs=(pl.BlockSpec((D, M), lambda i: (0, 0)),
                   pl.BlockSpec((D, M), lambda i: (0, 0))),
    )(xcol, wcat, bcat, g1, be1)


def conv2_bn_add_pool_pallas(hcol, w2, b2, g2, be2, br):
    KD, M = hcol.shape
    D = w2.shape[0]
    Mp = M // 4
    return pl.pallas_call(
        _make_conv2_bn_add_pool_kernel(Mp),
        out_shape=jax.ShapeDtypeStruct((D, Mp), jnp.float32),
        grid=(1,),
        in_specs=[pl.BlockSpec((KD, M), lambda i: (0, 0)),
                  pl.BlockSpec((D, KD), lambda i: (0, 0)),
                  pl.BlockSpec((D, 1), lambda i: (0, 0)),
                  pl.BlockSpec((D, 1), lambda i: (0, 0)),
                  pl.BlockSpec((D, 1), lambda i: (0, 0)),
                  pl.BlockSpec((D, M), lambda i: (0, 0))],
        out_specs=pl.BlockSpec((D, Mp), lambda i: (0, 0)),
    )(hcol, w2, b2, g2, be2, br)


# ------------------------------- JAX glue ----------------------------------
# Pure data movement (im2col / layout); no FLOPs here.

def _im2col_phase_major_T(y):
    """y: (C, N, H, W) -> (9*C, M) with rows ordered (tap, channel) and
    columns ordered pool-phase-major: (py, px, n, hh, wh)."""
    C, N, H, W = y.shape
    Hh, Wh = H // 2, W // 2
    yp = jnp.pad(y, ((0, 0), (0, 0), (1, 1), (1, 1)))
    taps = [yp[:, :, ky:ky + H, kx:kx + W]
            for ky in range(3) for kx in range(3)]          # 9 x (C,N,H,W)
    t = jnp.stack(taps, axis=0).reshape(9 * C, N, Hh, 2, Wh, 2)
    t = jnp.transpose(t, (0, 3, 5, 1, 2, 4))                # (9C, py, px, n, hh, wh)
    return t.reshape(9 * C, 4 * N * Hh * Wh)


def _from_phase_major(yp, N, H, W):
    """(C, M) phase-major columns -> (C, N, H, W)."""
    C = yp.shape[0]
    Hh, Wh = H // 2, W // 2
    y = yp.reshape(C, 2, 2, N, Hh, Wh)
    y = jnp.transpose(y, (0, 3, 4, 1, 5, 2))                # (C, N, Hh, py, Wh, px)
    return y.reshape(C, N, H, W)


def _weight_T(w_oihw):
    """torch Conv2d weight (Dout, Cin, 3, 3) -> (Dout, 9*Cin), columns
    ordered (tap, channel) to match _im2col_phase_major_T rows."""
    Dout, Cin, _, _ = w_oihw.shape
    return jnp.transpose(w_oihw, (0, 2, 3, 1)).reshape(Dout, 9 * Cin)


@jax.jit
def res_net_forward(x_nchw, params):
    N, Cin, H, W = x_nchw.shape
    D = params["w1"].shape[0]
    Hh, Wh = H // 2, W // 2
    # TODO(synk): phase-major pooling assumes even H, W (true for MaxPool2d(2)
    # on the 16x16 inputs this module is used with).

    x_cnhw = jnp.transpose(x_nchw, (1, 0, 2, 3)).astype(jnp.float32)
    xcol = _im2col_phase_major_T(x_cnhw)                    # (9*Cin, M)

    # Fuse conv1 and branch: concat weights along output channels.
    wcat = _weight_T(jnp.concatenate([params["w1"], params["wb"]], axis=0))
    bcat = jnp.concatenate([params["b1"], params["bb"]]).reshape(2 * D, 1)

    h1, br = conv1_branch_pallas(
        xcol, wcat, bcat,
        params["g1"].reshape(D, 1), params["be1"].reshape(D, 1), D)

    # im2col of the intermediate activation for conv2 (layout-only XLA work).
    h1_sp = _from_phase_major(h1, N, H, W)                  # (D, N, H, W)
    hcol = _im2col_phase_major_T(h1_sp)                     # (9*D, M)

    pooled = conv2_bn_add_pool_pallas(
        hcol, _weight_T(params["w2"]),
        params["b2"].reshape(D, 1), params["g2"].reshape(D, 1),
        params["be2"].reshape(D, 1), br)                    # (D, N*Hh*Wh)

    return jnp.transpose(pooled.reshape(D, N, Hh, Wh), (1, 0, 2, 3))  # NCHW


# -------------------------- pure-JAX reference -----------------------------

def res_net_reference(x, p):
    def conv(x, w, b):
        y = lax.conv_general_dilated(
            x, w, window_strides=(1, 1), padding=((1, 1), (1, 1)),
            dimension_numbers=("NCHW", "OIHW", "NCHW"),
            precision=lax.Precision.HIGHEST)
        return y + b[None, :, None, None]

    def bn(x, g, be):
        mean = x.mean(axis=(0, 2, 3), keepdims=True)
        var = ((x - mean) ** 2).mean(axis=(0, 2, 3), keepdims=True)
        return ((x - mean) * lax.rsqrt(var + EPS) * g[None, :, None, None]
                + be[None, :, None, None])

    h = jax.nn.relu(bn(conv(x, p["w1"], p["b1"]), p["g1"], p["be1"]))
    h = jax.nn.relu(bn(conv(h, p["w2"], p["b2"]), p["g2"], p["be2"]))
    out = h + conv(x, p["wb"], p["bb"])
    N, D, H, W = out.shape
    return out.reshape(N, D, H // 2, 2, W // 2, 2).max(axis=(3, 5))


# ---------------------------------- main ------------------------------------

if __name__ == "__main__":
    key = jax.random.PRNGKey(0)
    N, Cin, H, W = 2, 4, 16, 16   # batch=2, in_channel=4, 16x16 spatial
    D = 8                         # res_net(in_channel=4, D=8)

    ks = jax.random.split(key, 11)
    params = {
        "w1": 0.2 * jax.random.normal(ks[0], (D, Cin, 3, 3), jnp.float32),
        "b1": 0.1 * jax.random.normal(ks[1], (D,), jnp.float32),
        "g1": 1.0 + 0.1 * jax.random.normal(ks[2], (D,), jnp.float32),
        "be1": 0.1 * jax.random.normal(ks[3], (D,), jnp.float32),
        "w2": 0.2 * jax.random.normal(ks[4], (D, D, 3, 3), jnp.float32),
        "b2": 0.1 * jax.random.normal(ks[5], (D,), jnp.float32),
        "g2": 1.0 + 0.1 * jax.random.normal(ks[6], (D,), jnp.float32),
        "be2": 0.1 * jax.random.normal(ks[7], (D,), jnp.float32),
        "wb": 0.2 * jax.random.normal(ks[8], (D, Cin, 3, 3), jnp.float32),
        "bb": 0.1 * jax.random.normal(ks[9], (D,), jnp.float32),
    }
    x = jax.random.normal(ks[10], (N, Cin, H, W), jnp.float32)

    out = jax.block_until_ready(res_net_forward(x, params))
    assert out.shape == (N, D, H // 2, W // 2), out.shape

    ref = res_net_reference(x, params)
    if not jnp.allclose(out, ref, rtol=1e-2, atol=1e-2):
        raise AssertionError(
            f"mismatch vs reference, max abs err={float(jnp.max(jnp.abs(out - ref)))}")

    print("KERNEL_OK")
</pallas_src>

<mosaic_0001>
module attributes {stable_mosaic.version = 11 : i64} {
  func.func @kernel(%arg0: i32, %arg1: memref<36x512xf32, #tpu.memory_space<vmem>>, %arg2: memref<16x36xf32, #tpu.memory_space<vmem>>, %arg3: memref<16x1xf32, #tpu.memory_space<vmem>>, %arg4: memref<8x1xf32, #tpu.memory_space<vmem>>, %arg5: memref<8x1xf32, #tpu.memory_space<vmem>>, %arg6: memref<8x512xf32, #tpu.memory_space<vmem>>, %arg7: memref<8x512xf32, #tpu.memory_space<vmem>>) attributes {dimension_semantics = [#tpu.dimension_semantics<arbitrary>], iteration_bounds = array<i64: 1>, scalar_prefetch = 0 : i64, scratch_operands = 0 : i64, tpu.core_type = #tpu.core_type<tc>, window_params = [{pipeline_mode = #tpu.pipeline_mode<synchronous>, transform_indices = @transform_0, window_bounds = array<i64: 36, 512>}, {pipeline_mode = #tpu.pipeline_mode<synchronous>, transform_indices = @transform_1, window_bounds = array<i64: 16, 36>}, {pipeline_mode = #tpu.pipeline_mode<synchronous>, transform_indices = @transform_2, window_bounds = array<i64: 16, 1>}, {pipeline_mode = #tpu.pipeline_mode<synchronous>, transform_indices = @transform_3, window_bounds = array<i64: 8, 1>}, {pipeline_mode = #tpu.pipeline_mode<synchronous>, transform_indices = @transform_4, window_bounds = array<i64: 8, 1>}, {pipeline_mode = #tpu.pipeline_mode<synchronous>, transform_indices = @transform_5, window_bounds = array<i64: 8, 512>}, {pipeline_mode = #tpu.pipeline_mode<synchronous>, transform_indices = @transform_6, window_bounds = array<i64: 8, 512>}]} {
    %c0 = arith.constant 0 : index
    %c0_0 = arith.constant 0 : index
    %0 = vector.load %arg2[%c0, %c0_0] : memref<16x36xf32, #tpu.memory_space<vmem>>, vector<16x36xf32>
    %c0_1 = arith.constant 0 : index
    %c0_2 = arith.constant 0 : index
    %1 = vector.load %arg1[%c0_1, %c0_2] : memref<36x512xf32, #tpu.memory_space<vmem>>, vector<36x512xf32>
    %cst = arith.constant dense<0.000000e+00> : vector<16x512xf32>
    %2 = tpu.matmul %0, %1, %cst {dimension_numbers = #tpu.dot_dimension_numbers<[1], [0], [0], [1], [0, 0, 1, 1], [], []>} : vector<16x36xf32>, vector<36x512xf32>, vector<16x512xf32> -> vector<16x512xf32>
    %c0_3 = arith.constant 0 : index
    %c0_4 = arith.constant 0 : index
    %3 = vector.load %arg3[%c0_3, %c0_4] : memref<16x1xf32, #tpu.memory_space<vmem>>, vector<16x1xf32>
    %4 = vector.broadcast %3 : vector<16x1xf32> to vector<16x512xf32>
    %5 = arith.addf %2, %4 : vector<16x512xf32>
    %6 = vector.extract_strided_slice %5 {offsets = [0, 0], sizes = [8, 512], strides = [1, 1]} : vector<16x512xf32> to vector<8x512xf32>
    %7 = vector.extract_strided_slice %5 {offsets = [8, 0], sizes = [8, 512], strides = [1, 1]} : vector<16x512xf32> to vector<8x512xf32>
    %cst_5 = arith.constant dense<0.000000e+00> : vector<8xf32>
    %8 = vector.multi_reduction <add>, %6, %cst_5 [1] : vector<8x512xf32> to vector<8xf32>
    %9 = vector.shape_cast %8 : vector<8xf32> to vector<8x1xf32>
    %cst_6 = arith.constant 5.120000e+02 : f32
    %10 = vector.broadcast %cst_6 : f32 to vector<8x1xf32>
    %11 = arith.divf %9, %10 : vector<8x1xf32>
    %12 = vector.broadcast %11 : vector<8x1xf32> to vector<8x512xf32>
    %13 = arith.subf %6, %12 : vector<8x512xf32>
    %14 = arith.mulf %13, %13 : vector<8x512xf32>
    %cst_7 = arith.constant dense<0.000000e+00> : vector<8xf32>
    %15 = vector.multi_reduction <add>, %14, %cst_7 [1] : vector<8x512xf32> to vector<8xf32>
    %16 = vector.shape_cast %15 : vector<8xf32> to vector<8x1xf32>
    %cst_8 = arith.constant 5.120000e+02 : f32
    %17 = vector.broadcast %cst_8 : f32 to vector<8x1xf32>
    %18 = arith.divf %16, %17 : vector<8x1xf32>
    %19 = vector.broadcast %11 : vector<8x1xf32> to vector<8x512xf32>
    %20 = arith.subf %6, %19 : vector<8x512xf32>
    %cst_9 = arith.constant 9.99999974E-6 : f32
    %21 = vector.broadcast %cst_9 : f32 to vector<8x1xf32>
    %22 = arith.addf %18, %21 : vector<8x1xf32>
    %23 = math.rsqrt %22 : vector<8x1xf32>
    %24 = vector.broadcast %23 : vector<8x1xf32> to vector<8x512xf32>
    %25 = arith.mulf %20, %24 : vector<8x512xf32>
    %c0_10 = arith.constant 0 : index
    %c0_11 = arith.constant 0 : index
    %26 = vector.load %arg4[%c0_10, %c0_11] : memref<8x1xf32, #tpu.memory_space<vmem>>, vector<8x1xf32>
    %27 = vector.broadcast %26 : vector<8x1xf32> to vector<8x512xf32>
    %28 = arith.mulf %25, %27 : vector<8x512xf32>
    %c0_12 = arith.constant 0 : index
    %c0_13 = arith.constant 0 : index
    %29 = vector.load %arg5[%c0_12, %c0_13] : memref<8x1xf32, #tpu.memory_space<vmem>>, vector<8x1xf32>
    %30 = vector.broadcast %29 : vector<8x1xf32> to vector<8x512xf32>
    %31 = arith.addf %28, %30 : vector<8x512xf32>
    %cst_14 = arith.constant 0.000000e+00 : f32
    %32 = vector.broadcast %cst_14 : f32 to vector<8x512xf32>
    %33 = arith.maximumf %31, %32 : vector<8x512xf32>
    %c0_15 = arith.constant 0 : index
    %c0_16 = arith.constant 0 : index
    %34 = vector.load %arg6[%c0_15, %c0_16] : memref<8x512xf32, #tpu.memory_space<vmem>>, vector<8x512xf32>
    tpu.vector_store %arg6[%c0_15, %c0_16], %33 {strides = array<i32>} : memref<8x512xf32, #tpu.memory_space<vmem>>, vector<8x512xf32>,
    %c0_17 = arith.constant 0 : index
    %c0_18 = arith.constant 0 : index
    %35 = vector.load %arg7[%c0_17, %c0_18] : memref<8x512xf32, #tpu.memory_space<vmem>>, vector<8x512xf32>
    tpu.vector_store %arg7[%c0_17, %c0_18], %7 {strides = array<i32>} : memref<8x512xf32, #tpu.memory_space<vmem>>, vector<8x512xf32>,
    return
  }
  func.func @transform_0(%arg0: i32) -> (i32, i32) {
    %c0_i32 = arith.constant 0 : i32
    %c0_i32_0 = arith.constant 0 : i32
    %c0_i32_1 = arith.constant 0 : i32
    return %c0_i32, %c0_i32_0 : i32, i32
  }
  func.func @transform_1(%arg0: i32) -> (i32, i32) {
    %c0_i32 = arith.constant 0 : i32
    %c0_i32_0 = arith.constant 0 : i32
    %c0_i32_1 = arith.constant 0 : i32
    return %c0_i32, %c0_i32_0 : i32, i32
  }
  func.func @transform_2(%arg0: i32) -> (i32, i32) {
    %c0_i32 = arith.constant 0 : i32
    %c0_i32_0 = arith.constant 0 : i32
    %c0_i32_1 = arith.constant 0 : i32
    return %c0_i32, %c0_i32_0 : i32, i32
  }
  func.func @transform_3(%arg0: i32) -> (i32, i32) {
    %c0_i32 = arith.constant 0 : i32
    %c0_i32_0 = arith.constant 0 : i32
    %c0_i32_1 = arith.constant 0 : i32
    return %c0_i32, %c0_i32_0 : i32, i32
  }
  func.func @transform_4(%arg0: i32) -> (i32, i32) {
    %c0_i32 = arith.constant 0 : i32
    %c0_i32_0 = arith.constant 0 : i32
    %c0_i32_1 = arith.constant 0 : i32
    return %c0_i32, %c0_i32_0 : i32, i32
  }
  func.func @transform_5(%arg0: i32) -> (i32, i32) {
    %c0_i32 = arith.constant 0 : i32
    %c0_i32_0 = arith.constant 0 : i32
    %c0_i32_1 = arith.constant 0 : i32
    return %c0_i32, %c0_i32_0 : i32, i32
  }
  func.func @transform_6(%arg0: i32) -> (i32, i32) {
    %c0_i32 = arith.constant 0 : i32
    %c0_i32_0 = arith.constant 0 : i32
    %c0_i32_1 = arith.constant 0 : i32
    return %c0_i32, %c0_i32_0 : i32, i32
  }
}

module attributes {stable_mosaic.version = 11 : i64} {
  func.func @kernel(%arg0: i32, %arg1: memref<72x512xf32, #tpu.memory_space<vmem>>, %arg2: memref<8x72xf32, #tpu.memory_space<vmem>>, %arg3: memref<8x1xf32, #tpu.memory_space<vmem>>, %arg4: memref<8x1xf32, #tpu.memory_space<vmem>>, %arg5: memref<8x1xf32, #tpu.memory_space<vmem>>, %arg6: memref<8x512xf32, #tpu.memory_space<vmem>>, %arg7: memref<8x128xf32, #tpu.memory_space<vmem>>) attributes {dimension_semantics = [#tpu.dimension_semantics<arbitrary>], iteration_bounds = array<i64: 1>, scalar_prefetch = 0 : i64, scratch_operands = 0 : i64, tpu.core_type = #tpu.core_type<tc>, window_params = [{pipeline_mode = #tpu.pipeline_mode<synchronous>, transform_indices = @transform_0, window_bounds = array<i64: 72, 512>}, {pipeline_mode = #tpu.pipeline_mode<synchronous>, transform_indices = @transform_1, window_bounds = array<i64: 8, 72>}, {pipeline_mode = #tpu.pipeline_mode<synchronous>, transform_indices = @transform_2, window_bounds = array<i64: 8, 1>}, {pipeline_mode = #tpu.pipeline_mode<synchronous>, transform_indices = @transform_3, window_bounds = array<i64: 8, 1>}, {pipeline_mode = #tpu.pipeline_mode<synchronous>, transform_indices = @transform_4, window_bounds = array<i64: 8, 1>}, {pipeline_mode = #tpu.pipeline_mode<synchronous>, transform_indices = @transform_5, window_bounds = array<i64: 8, 512>}, {pipeline_mode = #tpu.pipeline_mode<synchronous>, transform_indices = @transform_6, window_bounds = array<i64: 8, 128>}]} {
    %c0 = arith.constant 0 : index
    %c0_0 = arith.constant 0 : index
    %0 = vector.load %arg2[%c0, %c0_0] : memref<8x72xf32, #tpu.memory_space<vmem>>, vector<8x72xf32>
    %c0_1 = arith.constant 0 : index
    %c0_2 = arith.constant 0 : index
    %1 = vector.load %arg1[%c0_1, %c0_2] : memref<72x512xf32, #tpu.memory_space<vmem>>, vector<72x512xf32>
    %cst = arith.constant dense<0.000000e+00> : vector<8x512xf32>
    %2 = tpu.matmul %0, %1, %cst {dimension_numbers = #tpu.dot_dimension_numbers<[1], [0], [0], [1], [0, 0, 1, 1], [], []>} : vector<8x72xf32>, vector<72x512xf32>, vector<8x512xf32> -> vector<8x512xf32>
    %c0_3 = arith.constant 0 : index
    %c0_4 = arith.constant 0 : index
    %3 = vector.load %arg3[%c0_3, %c0_4] : memref<8x1xf32, #tpu.memory_space<vmem>>, vector<8x1xf32>
    %4 = vector.broadcast %3 : vector<8x1xf32> to vector<8x512xf32>
    %5 = arith.addf %2, %4 : vector<8x512xf32>
    %cst_5 = arith.constant dense<0.000000e+00> : vector<8xf32>
    %6 = vector.multi_reduction <add>, %5, %cst_5 [1] : vector<8x512xf32> to vector<8xf32>
    %7 = vector.shape_cast %6 : vector<8xf32> to vector<8x1xf32>
    %cst_6 = arith.constant 5.120000e+02 : f32
    %8 = vector.broadcast %cst_6 : f32 to vector<8x1xf32>
    %9 = arith.divf %7, %8 : vector<8x1xf32>
    %10 = vector.broadcast %9 : vector<8x1xf32> to vector<8x512xf32>
    %11 = arith.subf %5, %10 : vector<8x512xf32>
    %12 = arith.mulf %11, %11 : vector<8x512xf32>
    %cst_7 = arith.constant dense<0.000000e+00> : vector<8xf32>
    %13 = vector.multi_reduction <add>, %12, %cst_7 [1] : vector<8x512xf32> to vector<8xf32>
    %14 = vector.shape_cast %13 : vector<8xf32> to vector<8x1xf32>
    %cst_8 = arith.constant 5.120000e+02 : f32
    %15 = vector.broadcast %cst_8 : f32 to vector<8x1xf32>
    %16 = arith.divf %14, %15 : vector<8x1xf32>
    %17 = vector.broadcast %9 : vector<8x1xf32> to vector<8x512xf32>
    %18 = arith.subf %5, %17 : vector<8x512xf32>
    %cst_9 = arith.constant 9.99999974E-6 : f32
    %19 = vector.broadcast %cst_9 : f32 to vector<8x1xf32>
    %20 = arith.addf %16, %19 : vector<8x1xf32>
    %21 = math.rsqrt %20 : vector<8x1xf32>
    %22 = vector.broadcast %21 : vector<8x1xf32> to vector<8x512xf32>
    %23 = arith.mulf %18, %22 : vector<8x512xf32>
    %c0_10 = arith.constant 0 : index
    %c0_11 = arith.constant 0 : index
    %24 = vector.load %arg4[%c0_10, %c0_11] : memref<8x1xf32, #tpu.memory_space<vmem>>, vector<8x1xf32>
    %25 = vector.broadcast %24 : vector<8x1xf32> to vector<8x512xf32>
    %26 = arith.mulf %23, %25 : vector<8x512xf32>
    %c0_12 = arith.constant 0 : index
    %c0_13 = arith.constant 0 : index
    %27 = vector.load %arg5[%c0_12, %c0_13] : memref<8x1xf32, #tpu.memory_space<vmem>>, vector<8x1xf32>
    %28 = vector.broadcast %27 : vector<8x1xf32> to vector<8x512xf32>
    %29 = arith.addf %26, %28 : vector<8x512xf32>
    %cst_14 = arith.constant 0.000000e+00 : f32
    %30 = vector.broadcast %cst_14 : f32 to vector<8x512xf32>
    %31 = arith.maximumf %29, %30 : vector<8x512xf32>
    %c0_15 = arith.constant 0 : index
    %c0_16 = arith.constant 0 : index
    %32 = vector.load %arg6[%c0_15, %c0_16] : memref<8x512xf32, #tpu.memory_space<vmem>>, vector<8x512xf32>
    %33 = arith.addf %31, %32 : vector<8x512xf32>
    %34 = vector.extract_strided_slice %33 {offsets = [0, 0], sizes = [8, 128], strides = [1, 1]} : vector<8x512xf32> to vector<8x128xf32>
    %35 = vector.extract_strided_slice %33 {offsets = [0, 128], sizes = [8, 128], strides = [1, 1]} : vector<8x512xf32> to vector<8x128xf32>
    %36 = arith.maximumf %34, %35 : vector<8x128xf32>
    %37 = vector.extract_strided_slice %33 {offsets = [0, 256], sizes = [8, 128], strides = [1, 1]} : vector<8x512xf32> to vector<8x128xf32>
    %38 = vector.extract_strided_slice %33 {offsets = [0, 384], sizes = [8, 128], strides = [1, 1]} : vector<8x512xf32> to vector<8x128xf32>
    %39 = arith.maximumf %37, %38 : vector<8x128xf32>
    %40 = arith.maximumf %36, %39 : vector<8x128xf32>
    %c0_17 = arith.constant 0 : index
    %c0_18 = arith.constant 0 : index
    %41 = vector.load %arg7[%c0_17, %c0_18] : memref<8x128xf32, #tpu.memory_space<vmem>>, vector<8x128xf32>
    tpu.vector_store %arg7[%c0_17, %c0_18], %40 {strides = array<i32>} : memref<8x128xf32, #tpu.memory_space<vmem>>, vector<8x128xf32>,
    return
  }
  func.func @transform_0(%arg0: i32) -> (i32, i32) {
    %c0_i32 = arith.constant 0 : i32
    %c0_i32_0 = arith.constant 0 : i32
    %c0_i32_1 = arith.constant 0 : i32
    return %c0_i32, %c0_i32_0 : i32, i32
  }
  func.func @transform_1(%arg0: i32) -> (i32, i32) {
    %c0_i32 = arith.constant 0 : i32
    %c0_i32_0 = arith.constant 0 : i32
    %c0_i32_1 = arith.constant 0 : i32
    return %c0_i32, %c0_i32_0 : i32, i32
  }
  func.func @transform_2(%arg0: i32) -> (i32, i32) {
    %c0_i32 = arith.constant 0 : i32
    %c0_i32_0 = arith.constant 0 : i32
    %c0_i32_1 = arith.constant 0 : i32
    return %c0_i32, %c0_i32_0 : i32, i32
  }
  func.func @transform_3(%arg0: i32) -> (i32, i32) {
    %c0_i32 = arith.constant 0 : i32
    %c0_i32_0 = arith.constant 0 : i32
    %c0_i32_1 = arith.constant 0 : i32
    return %c0_i32, %c0_i32_0 : i32, i32
  }
  func.func @transform_4(%arg0: i32) -> (i32, i32) {
    %c0_i32 = arith.constant 0 : i32
    %c0_i32_0 = arith.constant 0 : i32
    %c0_i32_1 = arith.constant 0 : i32
    return %c0_i32, %c0_i32_0 : i32, i32
  }
  func.func @transform_5(%arg0: i32) -> (i32, i32) {
    %c0_i32 = arith.constant 0 : i32
    %c0_i32_0 = arith.constant 0 : i32
    %c0_i32_1 = arith.constant 0 : i32
    return %c0_i32, %c0_i32_0 : i32, i32
  }
  func.func @transform_6(%arg0: i32) -> (i32, i32) {
    %c0_i32 = arith.constant 0 : i32
    %c0_i32_0 = arith.constant 0 : i32
    %c0_i32_1 = arith.constant 0 : i32
    return %c0_i32, %c0_i32_0 : i32, i32
  }
}

</mosaic_0001>

<llo_original>
// kernel: res_net_forward.2
$region0: #{res_net_forward.2}
  #allocation0 [shape = 'u32[]', space=smem, size = 0x4, offset = 0x4, fixed_abs, tag = 'smem constant byte address 0x4 - core index']
  #allocation1 [shape = 'u32[144,128]{1,0:T(1,128)}', space=vmem, size = 0x12000, scoped, tag = 'internal scratch']
  %s0 = inlined_call_operand.vmem [shape: f32[36,512], index: 0, kind: input, shape index: {}]
  %s1 = inlined_call_operand.vmem [shape: f32[16,36], index: 1, kind: input, shape index: {}]
  %s2 = inlined_call_operand.vmem [shape: f32[16,1], index: 2, kind: input, shape index: {}]
  %s3 = inlined_call_operand.vmem [shape: f32[8,1], index: 3, kind: input, shape index: {}]
  %s4 = inlined_call_operand.vmem [shape: f32[8,1], index: 4, kind: input, shape index: {}]
  %s5 = inlined_call_operand.vmem [shape: f32[8,512], index: 5, kind: output, shape index: {0}]
  %s6 = inlined_call_operand.vmem [shape: f32[8,512], index: 6, kind: output, shape index: {1}]
  %7 = xla_tuple %s5, %s6
  %s8 = sld [smem:[#allocation0]]
  $region38: #{res_net_forward.2} parent=0
    _
  %s10 = ssub.s32 1, %s8
  %s11 = scalar_select 0, %s10, %s8
  // Predicated region
  $region2: #{res_net_forward.2} parent=0 // pred_check
    _
  $region3: #{res_net_forward.2} parent=0 // pred_check_branch
    %13 = sbr.rel (0) target = $region5
  $region4: #{res_net_forward.2} parent=0 // pred_region
    _
  $region5: #{res_net_forward.2} parent=0 // pred_fallthru
    _
  // Predicated region
  $region6: #{res_net_forward.2} parent=0 // pred_check
    _
  $region7: #{res_net_forward.2} parent=0 // pred_check_branch
    %15 = sbr.rel (0) target = $region9
  $region8: #{res_net_forward.2} parent=0 // pred_region
    _
  $region9: #{res_net_forward.2} parent=0 // pred_fallthru
    _
  // Predicated region
  $region10: #{res_net_forward.2} parent=0 // pred_check
    _
  $region11: #{res_net_forward.2} parent=0 // pred_check_branch
    %17 = sbr.rel (0) target = $region13
  $region12: #{res_net_forward.2} parent=0 // pred_region
    _
  $region13: #{res_net_forward.2} parent=0 // pred_fallthru
    _
  // Predicated region
  $region14: #{res_net_forward.2} parent=0 // pred_check
    _
  $region15: #{res_net_forward.2} parent=0 // pred_check_branch
    %19 = sbr.rel (0) target = $region17
  $region16: #{res_net_forward.2} parent=0 // pred_region
    _
  $region17: #{res_net_forward.2} parent=0 // pred_fallthru
    _
  // Predicated region
  $region18: #{res_net_forward.2} parent=0 // pred_check
    _
  $region19: #{res_net_forward.2} parent=0 // pred_check_branch
    %21 = sbr.rel (0) target = $region21
  $region20: #{res_net_forward.2} parent=0 // pred_region
    _
  $region21: #{res_net_forward.2} parent=0 // pred_fallthru
    _
  %v22 = vld [vmem:[%s1] sm:$0xff]
  %v23 = vld [vmem:[%s1 + $0x8] sm:$0xff]
  %v24 = vld [vmem:[%s0] sm:$0xff]
  %v25 = vld [vmem:[%s0 + $0x8] sm:$0xff]
  %v26 = vld [vmem:[%s0 + $0x10] sm:$0xff]
  %v27 = vld [vmem:[%s0 + $0x18] sm:$0xff]
  %v28 = vld [vmem:[%s0 + $0x20] sm:$0xff]
  %v29 = vld [vmem:[%s0 + $0x28] sm:$0xff]
  %v30 = vld [vmem:[%s0 + $0x30] sm:$0xff]
  %v31 = vld [vmem:[%s0 + $0x38] sm:$0xff]
  %v32 = vld [vmem:[%s0 + $0x40] sm:$0xff]
  %v33 = vld [vmem:[%s0 + $0x48] sm:$0xff]
  %v34 = vld [vmem:[%s0 + $0x50] sm:$0xff]
  %v35 = vld [vmem:[%s0 + $0x58] sm:$0xff]
  %v36 = vld [vmem:[%s0 + $0x60] sm:$0xff]
  %v37 = vld [vmem:[%s0 + $0x68] sm:$0xff]
  %v38 = vld [vmem:[%s0 + $0x70] sm:$0xff]
  %v39 = vld [vmem:[%s0 + $0x78] sm:$0xff]
  %v40 = vld [vmem:[%s0 + $0x80] sm:$0xf]
  %v41 = vld [vmem:[%s0 + $0x88] sm:$0xf]
  %v42 = vld [vmem:[%s0 + $0x90] sm:$0xf]
  %v43 = vld [vmem:[%s0 + $0x98] sm:$0xf]
  %v44 = vld [vmem:[%s2] sm:$0xff]
  %v45 = vld [vmem:[%s2 + $0x8] sm:$0xff]
  %47 = vset.pattern.permute.xlu0 0
  %48 = vperm.xlu0 %47, %v44
  %v49 = vpop.permute.xlu0 %48
  %52 = vset.pattern.permute.xlu0 0
  %53 = vperm.xlu0 %52, %v45
  %v54 = vpop.permute.xlu0 %53
  %vm56 = vcmask 293888
  %v58 = vsel %vm56, %v22, 0
  %v61 = vsel %vm56, %v23, 0
  %vm63 = vcmask 1043456
  %v65 = vsel %vm63, %v40, 0
  %v68 = vsel %vm63, %v41, 0
  %v71 = vsel %vm63, %v42, 0
  %v74 = vsel %vm63, %v43, 0
  %76 = vmatprep.subr.mxu0 0.0
  %77 = vmatpush1.msra.mxu0 0.0
  %78 = vmatprep.subr.mxu0 0.0
  %79 = vmatpush1.msra.mxu0 0.0
  %80 = vmatprep.subr.mxu0 0.0
  %81 = vmatpush1.msra.mxu0 0.0
  %82 = vmatprep.subr.mxu0 0.0
  %83 = vmatpush1.msra.mxu0 0.0
  %84 = vmatprep.subr.mxu0 0.0
  %85 = vmatpush1.msra.mxu0 0.0
  %86 = vmatprep.subr.mxu0 0.0
  %87 = vmatpush1.msra.mxu0 0.0
  %88 = vmatprep.subr.mxu0 0.0
  %89 = vmatpush1.msra.mxu0 0.0
  %90 = vmatprep.subr.mxu0 0.0
  %91 = vmatpush1.msra.mxu0 0.0
  %92 = vmatprep.subr.mxu0 0.0
  %93 = vmatpush1.msra.mxu0 0.0
  %94 = vmatprep.subr.mxu0 0.0
  %95 = vmatpush1.msra.mxu0 0.0
  %96 = vmatprep.subr.mxu0 0.0
  %97 = vmatpush1.msra.mxu0 0.0
  %98 = vmatprep.subr.mxu0 %v68
  %99 = vmatpush1.msra.mxu0 %v65
  %100 = vmatprep.subr.mxu0 %v37
  %101 = vmatpush1.msra.mxu0 %v36
  %102 = vmatprep.subr.mxu0 %v33
  %103 = vmatpush1.msra.mxu0 %v32
  %104 = vmatprep.subr.mxu0 %v29
  %105 = vmatpush1.msra.mxu0 %v28
  %106 = vmatprep.subr.mxu0 %v25
  %107 = vmatpush1.msra.mxu0 %v24
  %108 = vmatprep.subr.mxu0 0.0
  %109 = vmatpush2.msra.mxu0 0.0
  %110 = vmatprep.subr.mxu0 0.0
  %111 = vmatpush2.msra.mxu0 0.0
  %112 = vmatprep.subr.mxu0 0.0
  %113 = vmatpush2.msra.mxu0 0.0
  %114 = vmatprep.subr.mxu0 0.0
  %115 = vmatpush2.msra.mxu0 0.0
  %116 = vmatprep.subr.mxu0 0.0
  %117 = vmatpush2.msra.mxu0 0.0
  %118 = vmatprep.subr.mxu0 0.0
  %119 = vmatpush2.msra.mxu0 0.0
  %120 = vmatprep.subr.mxu0 0.0
  %121 = vmatpush2.msra.mxu0 0.0
  %122 = vmatprep.subr.mxu0 0.0
  %123 = vmatpush2.msra.mxu0 0.0
  %124 = vmatprep.subr.mxu0 0.0
  %125 = vmatpush2.msra.mxu0 0.0
  %126 = vmatprep.subr.mxu0 0.0
  %127 = vmatpush2.msra.mxu0 0.0
  %128 = vmatprep.subr.mxu0 0.0
  %129 = vmatpush2.msra.mxu0 0.0
  %130 = vmatprep.subr.mxu0 0.0
  %131 = vmatpush2.msra.mxu0 0.0
  %132 = vmatprep.subr.mxu0 0.0
  %133 = vmatpush2.msra.mxu0 0.0
  %134 = vmatprep.subr.mxu0 0.0
  %135 = vmatpush2.msra.mxu0 0.0
  %136 = vmatprep.subr.mxu0 0.0
  %137 = vmatpush2.msra.mxu0 0.0
  %138 = vmatprep.subr.mxu0 0.0
  %139 = vmatpush2.msra.mxu0 0.0
  %140 = vmatprep.mubr.f32.mxu0 0.0
  %141 = vmatmul.mubr.f32.gmra.mxu0 %v58
  %v142 = vpop.f32.mrf.mxu0
  %v143 = vadd.f32 %v49, %v142
  %v144 = vpop.f32.mrf.mxu0
  %v145 = vadd.f32 %v49, %v144
  %146 = vmatprep.mubr.f32.mxu0 0.0
  %147 = vmatmul.mubr.f32.gmra.mxu0 %v61
  %v148 = vpop.f32.mrf.mxu0
  %v149 = vadd.f32 %v54, %v148
  %v150 = vpop.f32.mrf.mxu0
  %v151 = vadd.f32 %v54, %v150
  %152 = vdwg.mxu0
  %153 = vmatprep.subr.mxu0 0.0
  %154 = vmatpush1.msra.mxu0 0.0
  %155 = vmatprep.subr.mxu0 0.0
  %156 = vmatpush1.msra.mxu0 0.0
  %157 = vmatprep.subr.mxu0 0.0
  %158 = vmatpush1.msra.mxu0 0.0
  %159 = vmatprep.subr.mxu0 0.0
  %160 = vmatpush1.msra.mxu0 0.0
  %161 = vmatprep.subr.mxu0 0.0
  %162 = vmatpush1.msra.mxu0 0.0
  %163 = vmatprep.subr.mxu0 0.0
  %164 = vmatpush1.msra.mxu0 0.0
  %165 = vmatprep.subr.mxu0 0.0
  %166 = vmatpush1.msra.mxu0 0.0
  %167 = vmatprep.subr.mxu0 0.0
  %168 = vmatpush1.msra.mxu0 0.0
  %169 = vmatprep.subr.mxu0 0.0
  %170 = vmatpush1.msra.mxu0 0.0
  %171 = vmatprep.subr.mxu0 0.0
  %172 = vmatpush1.msra.mxu0 0.0
  %173 = vmatprep.subr.mxu0 0.0
  %174 = vmatpush1.msra.mxu0 0.0
  %175 = vmatprep.subr.mxu0 %v74
  %176 = vmatpush1.msra.mxu0 %v71
  %177 = vmatprep.subr.mxu0 %v39
  %178 = vmatpush1.msra.mxu0 %v38
  %179 = vmatprep.subr.mxu0 %v35
  %180 = vmatpush1.msra.mxu0 %v34
  %181 = vmatprep.subr.mxu0 %v31
  %182 = vmatpush1.msra.mxu0 %v30
  %183 = vmatprep.subr.mxu0 %v27
  %184 = vmatpush1.msra.mxu0 %v26
  %185 = vmatprep.subr.mxu0 0.0
  %186 = vmatpush2.msra.mxu0 0.0
  %187 = vmatprep.subr.mxu0 0.0
  %188 = vmatpush2.msra.mxu0 0.0
  %189 = vmatprep.subr.mxu0 0.0
  %190 = vmatpush2.msra.mxu0 0.0
  %191 = vmatprep.subr.mxu0 0.0
  %192 = vmatpush2.msra.mxu0 0.0
  %193 = vmatprep.subr.mxu0 0.0
  %194 = vmatpush2.msra.mxu0 0.0
  %195 = vmatprep.subr.mxu0 0.0
  %196 = vmatpush2.msra.mxu0 0.0
  %197 = vmatprep.subr.mxu0 0.0
  %198 = vmatpush2.msra.mxu0 0.0
  %199 = vmatprep.subr.mxu0 0.0
  %200 = vmatpush2.msra.mxu0 0.0
  %201 = vmatprep.subr.mxu0 0.0
  %202 = vmatpush2.msra.mxu0 0.0
  %203 = vmatprep.subr.mxu0 0.0
  %204 = vmatpush2.msra.mxu0 0.0
  %205 = vmatprep.subr.mxu0 0.0
  %206 = vmatpush2.msra.mxu0 0.0
  %207 = vmatprep.subr.mxu0 0.0
  %208 = vmatpush2.msra.mxu0 0.0
  %209 = vmatprep.subr.mxu0 0.0
  %210 = vmatpush2.msra.mxu0 0.0
  %211 = vmatprep.subr.mxu0 0.0
  %212 = vmatpush2.msra.mxu0 0.0
  %213 = vmatprep.subr.mxu0 0.0
  %214 = vmatpush2.msra.mxu0 0.0
  %215 = vmatprep.subr.mxu0 0.0
  %216 = vmatpush2.msra.mxu0 0.0
  %217 = vmatprep.mubr.f32.mxu0 0.0
  %218 = vmatmul.mubr.f32.gmra.mxu0 %v58
  %v219 = vpop.f32.mrf.mxu0
  %v220 = vadd.f32 %v49, %v219
  %v221 = vpop.f32.mrf.mxu0
  %v222 = vadd.f32 %v49, %v221
  %223 = vmatprep.mubr.f32.mxu0 0.0
  %224 = vmatmul.mubr.f32.gmra.mxu0 %v61
  %v225 = vpop.f32.mrf.mxu0
  %v226 = vadd.f32 %v54, %v225
  %v227 = vpop.f32.mrf.mxu0
  %v228 = vadd.f32 %v54, %v227
  %229 = vdwg.mxu0
  %v230 = vadd.f32 %v143, %v145
  %v231 = vadd.f32 %v230, %v220
  %v232 = vadd.f32 %v231, %v222
  %233 = vadd.xlane.f32.xlu0 %v232
  %v234 = vpop.xlane.xlu0 %233
  %v235 = vrcp.pop 512.0
  %v236 = vmul.f32 %v234, %v235
  %v237 = vsub.f32 %v143, %v236
  %v238 = vsub.f32 %v145, %v236
  %v239 = vsub.f32 %v220, %v236
  %v240 = vsub.f32 %v222, %v236
  %v241 = vmul.f32 %v237, %v237
  %v242 = vmul.f32 %v238, %v238
  %v243 = vmul.f32 %v239, %v239
  %v244 = vmul.f32 %v240, %v240
  %v245 = vadd.f32 %v241, %v242
  %v246 = vadd.f32 %v245, %v243
  %v247 = vadd.f32 %v246, %v244
  %248 = vadd.xlane.f32.xlu0 %v247
  %v249 = vpop.xlane.xlu0 %248
  %v250 = vmul.f32 %v249, %v235
  %v251 = vadd.f32 %v250, 1e-05
  %v252 = vrsqrt.pop %v251
  %v253 = vmul.f32 %v237, %v252
  %v254 = vmul.f32 %v238, %v252
  %v255 = vmul.f32 %v239, %v252
  %v256 = vmul.f32 %v240, %v252
  %v257 = vld [vmem:[%s3] sm:$0xff]
  %259 = vset.pattern.permute.xlu0 0
  %260 = vperm.xlu0 %259, %v257
  %v261 = vpop.permute.xlu0 %260
  %v263 = vmul.f32 %v253, %v261
  %v264 = vmul.f32 %v254, %v261
  %v265 = vmul.f32 %v255, %v261
  %v266 = vmul.f32 %v256, %v261
  %v267 = vld [vmem:[%s4] sm:$0xff]
  %269 = vset.pattern.permute.xlu0 0
  %270 = vperm.xlu0 %269, %v267
  %v271 = vpop.permute.xlu0 %270
  %v273 = vadd.f32 %v263, %v271
  %v274 = vadd.f32 %v264, %v271
  %v275 = vadd.f32 %v265, %v271
  %v276 = vadd.f32 %v266, %v271
  %v277 = vmax.f32 %v273, 0.0
  %v278 = vmax.f32 %v274, 0.0
  %v279 = vmax.f32 %v275, 0.0
  %v280 = vmax.f32 %v276, 0.0
  %281 = vst [vmem:[%s5] sm:$0xff] %v277
  %282 = vst [vmem:[%s5 + $0x8] sm:$0xff] %v278
  %283 = vst [vmem:[%s5 + $0x10] sm:$0xff] %v279
  %284 = vst [vmem:[%s5 + $0x18] sm:$0xff] %v280
  %285 = vst [vmem:[%s6] sm:$0xff] %v149
  %286 = vst [vmem:[%s6 + $0x8] sm:$0xff] %v151
  %287 = vst [vmem:[%s6 + $0x10] sm:$0xff] %v226
  %288 = vst [vmem:[%s6 + $0x18] sm:$0xff] %v228
  // Predicated region
  $region22: #{res_net_forward.2} parent=0 // pred_check
    _
  $region23: #{res_net_forward.2} parent=0 // pred_check_branch
    %290 = sbr.rel (0) target = $region25
  $region24: #{res_net_forward.2} parent=0 // pred_region
    _
  $region25: #{res_net_forward.2} parent=0 // pred_fallthru
    _
  // Predicated region
  $region26: #{res_net_forward.2} parent=0 // pred_check
    _
  $region27: #{res_net_forward.2} parent=0 // pred_check_branch
    %292 = sbr.rel (0) target = $region29
  $region28: #{res_net_forward.2} parent=0 // pred_region
    _
  $region29: #{res_net_forward.2} parent=0 // pred_fallthru
    _
  // Predicated region
  $region30: #{res_net_forward.2} parent=0 // pred_check
    _
  $region31: #{res_net_forward.2} parent=0 // pred_check_branch
    %294 = sbr.rel (0) target = $region33
  $region32: #{res_net_forward.2} parent=0 // pred_region
    _
  $region33: #{res_net_forward.2} parent=0 // pred_fallthru
    _
  // Predicated region
  $region34: #{res_net_forward.2} parent=0 // pred_check
    _
  $region35: #{res_net_forward.2} parent=0 // pred_check_branch
    %296 = sbr.rel (0) target = $region37
  $region36: #{res_net_forward.2} parent=0 // pred_region
    _
  $region37: #{res_net_forward.2} parent=0 // pred_fallthru
    _

// kernel: res_net_forward.3
$region0: #{res_net_forward.3}
  #allocation0 [shape = 'u32[]', space=smem, size = 0x4, offset = 0x4, fixed_abs, tag = 'smem constant byte address 0x4 - core index']
  #allocation1 [shape = 'u32[144,128]{1,0:T(1,128)}', space=vmem, size = 0x12000, scoped, tag = 'internal scratch']
  %s0 = inlined_call_operand.vmem [shape: f32[72,512], index: 0, kind: input, shape index: {}]
  %s1 = inlined_call_operand.vmem [shape: f32[8,72], index: 1, kind: input, shape index: {}]
  %s2 = inlined_call_operand.vmem [shape: f32[8,1], index: 2, kind: input, shape index: {}]
  %s3 = inlined_call_operand.vmem [shape: f32[8,1], index: 3, kind: input, shape index: {}]
  %s4 = inlined_call_operand.vmem [shape: f32[8,1], index: 4, kind: input, shape index: {}]
  %s5 = inlined_call_operand.vmem [shape: f32[8,512], index: 5, kind: input, shape index: {}]
  %s6 = inlined_call_operand.vmem [shape: f32[8,128], index: 6, kind: output, shape index: {}]
  %s7 = sld [smem:[#allocation0]]
  $region34: #{res_net_forward.3} parent=0
    _
  %s9 = ssub.s32 1, %s7
  %s10 = scalar_select 0, %s9, %s7
  // Predicated region
  $region2: #{res_net_forward.3} parent=0 // pred_check
    _
  $region3: #{res_net_forward.3} parent=0 // pred_check_branch
    %12 = sbr.rel (0) target = $region5
  $region4: #{res_net_forward.3} parent=0 // pred_region
    _
  $region5: #{res_net_forward.3} parent=0 // pred_fallthru
    _
  // Predicated region
  $region6: #{res_net_forward.3} parent=0 // pred_check
    _
  $region7: #{res_net_forward.3} parent=0 // pred_check_branch
    %14 = sbr.rel (0) target = $region9
  $region8: #{res_net_forward.3} parent=0 // pred_region
    _
  $region9: #{res_net_forward.3} parent=0 // pred_fallthru
    _
  // Predicated region
  $region10: #{res_net_forward.3} parent=0 // pred_check
    _
  $region11: #{res_net_forward.3} parent=0 // pred_check_branch
    %16 = sbr.rel (0) target = $region13
  $region12: #{res_net_forward.3} parent=0 // pred_region
    _
  $region13: #{res_net_forward.3} parent=0 // pred_fallthru
    _
  // Predicated region
  $region14: #{res_net_forward.3} parent=0 // pred_check
    _
  $region15: #{res_net_forward.3} parent=0 // pred_check_branch
    %18 = sbr.rel (0) target = $region17
  $region16: #{res_net_forward.3} parent=0 // pred_region
    _
  $region17: #{res_net_forward.3} parent=0 // pred_fallthru
    _
  // Predicated region
  $region18: #{res_net_forward.3} parent=0 // pred_check
    _
  $region19: #{res_net_forward.3} parent=0 // pred_check_branch
    %20 = sbr.rel (0) target = $region21
  $region20: #{res_net_forward.3} parent=0 // pred_region
    _
  $region21: #{res_net_forward.3} parent=0 // pred_fallthru
    _
  // Predicated region
  $region22: #{res_net_forward.3} parent=0 // pred_check
    _
  $region23: #{res_net_forward.3} parent=0 // pred_check_branch
    %22 = sbr.rel (0) target = $region25
  $region24: #{res_net_forward.3} parent=0 // pred_region
    _
  $region25: #{res_net_forward.3} parent=0 // pred_fallthru
    _
  %v23 = vld [vmem:[%s1] sm:$0xff]
  %v24 = vld [vmem:[%s0] sm:$0xff]
  %v25 = vld [vmem:[%s0 + $0x8] sm:$0xff]
  %v26 = vld [vmem:[%s0 + $0x10] sm:$0xff]
  %v27 = vld [vmem:[%s0 + $0x18] sm:$0xff]
  %v28 = vld [vmem:[%s0 + $0x20] sm:$0xff]
  %v29 = vld [vmem:[%s0 + $0x28] sm:$0xff]
  %v30 = vld [vmem:[%s0 + $0x30] sm:$0xff]
  %v31 = vld [vmem:[%s0 + $0x38] sm:$0xff]
  %v32 = vld [vmem:[%s0 + $0x40] sm:$0xff]
  %v33 = vld [vmem:[%s0 + $0x48] sm:$0xff]
  %v34 = vld [vmem:[%s0 + $0x50] sm:$0xff]
  %v35 = vld [vmem:[%s0 + $0x58] sm:$0xff]
  %v36 = vld [vmem:[%s0 + $0x60] sm:$0xff]
  %v37 = vld [vmem:[%s0 + $0x68] sm:$0xff]
  %v38 = vld [vmem:[%s0 + $0x70] sm:$0xff]
  %v39 = vld [vmem:[%s0 + $0x78] sm:$0xff]
  %v40 = vld [vmem:[%s0 + $0x80] sm:$0xff]
  %v41 = vld [vmem:[%s0 + $0x88] sm:$0xff]
  %v42 = vld [vmem:[%s0 + $0x90] sm:$0xff]
  %v43 = vld [vmem:[%s0 + $0x98] sm:$0xff]
  %v44 = vld [vmem:[%s0 + $0xa0] sm:$0xff]
  %v45 = vld [vmem:[%s0 + $0xa8] sm:$0xff]
  %v46 = vld [vmem:[%s0 + $0xb0] sm:$0xff]
  %v47 = vld [vmem:[%s0 + $0xb8] sm:$0xff]
  %v48 = vld [vmem:[%s0 + $0xc0] sm:$0xff]
  %v49 = vld [vmem:[%s0 + $0xc8] sm:$0xff]
  %v50 = vld [vmem:[%s0 + $0xd0] sm:$0xff]
  %v51 = vld [vmem:[%s0 + $0xd8] sm:$0xff]
  %v52 = vld [vmem:[%s0 + $0xe0] sm:$0xff]
  %v53 = vld [vmem:[%s0 + $0xe8] sm:$0xff]
  %v54 = vld [vmem:[%s0 + $0xf0] sm:$0xff]
  %v55 = vld [vmem:[%s0 + $0xf8] sm:$0xff]
  %v56 = vld [vmem:[%s0 + $0x100] sm:$0xff]
  %v57 = vld [vmem:[%s0 + $0x108] sm:$0xff]
  %v58 = vld [vmem:[%s0 + $0x110] sm:$0xff]
  %v59 = vld [vmem:[%s0 + $0x118] sm:$0xff]
  %v60 = vld [vmem:[%s2] sm:$0xff]
  %62 = vset.pattern.permute.xlu0 0
  %63 = vperm.xlu0 %62, %v60
  %v64 = vpop.permute.xlu0 %63
  %vm66 = vcmask 588800
  %v68 = vsel %vm66, %v23, 0
  %70 = vmatprep.subr.mxu0 0.0
  %71 = vmatpush1.msra.mxu0 0.0
  %72 = vmatprep.subr.mxu0 0.0
  %73 = vmatpush1.msra.mxu0 0.0
  %74 = vmatprep.subr.mxu0 0.0
  %75 = vmatpush1.msra.mxu0 0.0
  %76 = vmatprep.subr.mxu0 0.0
  %77 = vmatpush1.msra.mxu0 0.0
  %78 = vmatprep.subr.mxu0 0.0
  %79 = vmatpush1.msra.mxu0 0.0
  %80 = vmatprep.subr.mxu0 0.0
  %81 = vmatpush1.msra.mxu0 0.0
  %82 = vmatprep.subr.mxu0 0.0
  %83 = vmatpush1.msra.mxu0 0.0
  %84 = vmatprep.subr.mxu0 %v57
  %85 = vmatpush1.msra.mxu0 %v56
  %86 = vmatprep.subr.mxu0 %v53
  %87 = vmatpush1.msra.mxu0 %v52
  %88 = vmatprep.subr.mxu0 %v49
  %89 = vmatpush1.msra.mxu0 %v48
  %90 = vmatprep.subr.mxu0 %v45
  %91 = vmatpush1.msra.mxu0 %v44
  %92 = vmatprep.subr.mxu0 %v41
  %93 = vmatpush1.msra.mxu0 %v40
  %94 = vmatprep.subr.mxu0 %v37
  %95 = vmatpush1.msra.mxu0 %v36
  %96 = vmatprep.subr.mxu0 %v33
  %97 = vmatpush1.msra.mxu0 %v32
  %98 = vmatprep.subr.mxu0 %v29
  %99 = vmatpush1.msra.mxu0 %v28
  %100 = vmatprep.subr.mxu0 %v25
  %101 = vmatpush1.msra.mxu0 %v24
  %102 = vmatprep.subr.mxu0 0.0
  %103 = vmatpush2.msra.mxu0 0.0
  %104 = vmatprep.subr.mxu0 0.0
  %105 = vmatpush2.msra.mxu0 0.0
  %106 = vmatprep.subr.mxu0 0.0
  %107 = vmatpush2.msra.mxu0 0.0
  %108 = vmatprep.subr.mxu0 0.0
  %109 = vmatpush2.msra.mxu0 0.0
  %110 = vmatprep.subr.mxu0 0.0
  %111 = vmatpush2.msra.mxu0 0.0
  %112 = vmatprep.subr.mxu0 0.0
  %113 = vmatpush2.msra.mxu0 0.0
  %114 = vmatprep.subr.mxu0 0.0
  %115 = vmatpush2.msra.mxu0 0.0
  %116 = vmatprep.subr.mxu0 0.0
  %117 = vmatpush2.msra.mxu0 0.0
  %118 = vmatprep.subr.mxu0 0.0
  %119 = vmatpush2.msra.mxu0 0.0
  %120 = vmatprep.subr.mxu0 0.0
  %121 = vmatpush2.msra.mxu0 0.0
  %122 = vmatprep.subr.mxu0 0.0
  %123 = vmatpush2.msra.mxu0 0.0
  %124 = vmatprep.subr.mxu0 0.0
  %125 = vmatpush2.msra.mxu0 0.0
  %126 = vmatprep.subr.mxu0 0.0
  %127 = vmatpush2.msra.mxu0 0.0
  %128 = vmatprep.subr.mxu0 0.0
  %129 = vmatpush2.msra.mxu0 0.0
  %130 = vmatprep.subr.mxu0 0.0
  %131 = vmatpush2.msra.mxu0 0.0
  %132 = vmatprep.subr.mxu0 0.0
  %133 = vmatpush2.msra.mxu0 0.0
  %134 = vmatprep.mubr.f32.mxu0 0.0
  %135 = vmatmul.mubr.f32.gmra.mxu0 %v68
  %v136 = vpop.f32.mrf.mxu0
  %v137 = vadd.f32 %v64, %v136
  %v138 = vpop.f32.mrf.mxu0
  %v139 = vadd.f32 %v64, %v138
  %140 = vdwg.mxu0
  %141 = vmatprep.subr.mxu0 0.0
  %142 = vmatpush1.msra.mxu0 0.0
  %143 = vmatprep.subr.mxu0 0.0
  %144 = vmatpush1.msra.mxu0 0.0
  %145 = vmatprep.subr.mxu0 0.0
  %146 = vmatpush1.msra.mxu0 0.0
  %147 = vmatprep.subr.mxu0 0.0
  %148 = vmatpush1.msra.mxu0 0.0
  %149 = vmatprep.subr.mxu0 0.0
  %150 = vmatpush1.msra.mxu0 0.0
  %151 = vmatprep.subr.mxu0 0.0
  %152 = vmatpush1.msra.mxu0 0.0
  %153 = vmatprep.subr.mxu0 0.0
  %154 = vmatpush1.msra.mxu0 0.0
  %155 = vmatprep.subr.mxu0 %v59
  %156 = vmatpush1.msra.mxu0 %v58
  %157 = vmatprep.subr.mxu0 %v55
  %158 = vmatpush1.msra.mxu0 %v54
  %159 = vmatprep.subr.mxu0 %v51
  %160 = vmatpush1.msra.mxu0 %v50
  %161 = vmatprep.subr.mxu0 %v47
  %162 = vmatpush1.msra.mxu0 %v46
  %163 = vmatprep.subr.mxu0 %v43
  %164 = vmatpush1.msra.mxu0 %v42
  %165 = vmatprep.subr.mxu0 %v39
  %166 = vmatpush1.msra.mxu0 %v38
  %167 = vmatprep.subr.mxu0 %v35
  %168 = vmatpush1.msra.mxu0 %v34
  %169 = vmatprep.subr.mxu0 %v31
  %170 = vmatpush1.msra.mxu0 %v30
  %171 = vmatprep.subr.mxu0 %v27
  %172 = vmatpush1.msra.mxu0 %v26
  %173 = vmatprep.subr.mxu0 0.0
  %174 = vmatpush2.msra.mxu0 0.0
  %175 = vmatprep.subr.mxu0 0.0
  %176 = vmatpush2.msra.mxu0 0.0
  %177 = vmatprep.subr.mxu0 0.0
  %178 = vmatpush2.msra.mxu0 0.0
  %179 = vmatprep.subr.mxu0 0.0
  %180 = vmatpush2.msra.mxu0 0.0
  %181 = vmatprep.subr.mxu0 0.0
  %182 = vmatpush2.msra.mxu0 0.0
  %183 = vmatprep.subr.mxu0 0.0
  %184 = vmatpush2.msra.mxu0 0.0
  %185 = vmatprep.subr.mxu0 0.0
  %186 = vmatpush2.msra.mxu0 0.0
  %187 = vmatprep.subr.mxu0 0.0
  %188 = vmatpush2.msra.mxu0 0.0
  %189 = vmatprep.subr.mxu0 0.0
  %190 = vmatpush2.msra.mxu0 0.0
  %191 = vmatprep.subr.mxu0 0.0
  %192 = vmatpush2.msra.mxu0 0.0
  %193 = vmatprep.subr.mxu0 0.0
  %194 = vmatpush2.msra.mxu0 0.0
  %195 = vmatprep.subr.mxu0 0.0
  %196 = vmatpush2.msra.mxu0 0.0
  %197 = vmatprep.subr.mxu0 0.0
  %198 = vmatpush2.msra.mxu0 0.0
  %199 = vmatprep.subr.mxu0 0.0
  %200 = vmatpush2.msra.mxu0 0.0
  %201 = vmatprep.subr.mxu0 0.0
  %202 = vmatpush2.msra.mxu0 0.0
  %203 = vmatprep.subr.mxu0 0.0
  %204 = vmatpush2.msra.mxu0 0.0
  %205 = vmatprep.mubr.f32.mxu0 0.0
  %206 = vmatmul.mubr.f32.gmra.mxu0 %v68
  %v207 = vpop.f32.mrf.mxu0
  %v208 = vadd.f32 %v64, %v207
  %v209 = vpop.f32.mrf.mxu0
  %v210 = vadd.f32 %v64, %v209
  %211 = vdwg.mxu0
  %v212 = vadd.f32 %v137, %v139
  %v213 = vadd.f32 %v212, %v208
  %v214 = vadd.f32 %v213, %v210
  %215 = vadd.xlane.f32.xlu0 %v214
  %v216 = vpop.xlane.xlu0 %215
  %v217 = vrcp.pop 512.0
  %v218 = vmul.f32 %v216, %v217
  %v219 = vsub.f32 %v137, %v218
  %v220 = vsub.f32 %v139, %v218
  %v221 = vsub.f32 %v208, %v218
  %v222 = vsub.f32 %v210, %v218
  %v223 = vmul.f32 %v219, %v219
  %v224 = vmul.f32 %v220, %v220
  %v225 = vmul.f32 %v221, %v221
  %v226 = vmul.f32 %v222, %v222
  %v227 = vadd.f32 %v223, %v224
  %v228 = vadd.f32 %v227, %v225
  %v229 = vadd.f32 %v228, %v226
  %230 = vadd.xlane.f32.xlu0 %v229
  %v231 = vpop.xlane.xlu0 %230
  %v232 = vmul.f32 %v231, %v217
  %v233 = vadd.f32 %v232, 1e-05
  %v234 = vrsqrt.pop %v233
  %v235 = vmul.f32 %v219, %v234
  %v236 = vmul.f32 %v220, %v234
  %v237 = vmul.f32 %v221, %v234
  %v238 = vmul.f32 %v222, %v234
  %v239 = vld [vmem:[%s3] sm:$0xff]
  %241 = vset.pattern.permute.xlu0 0
  %242 = vperm.xlu0 %241, %v239
  %v243 = vpop.permute.xlu0 %242
  %v245 = vmul.f32 %v235, %v243
  %v246 = vmul.f32 %v236, %v243
  %v247 = vmul.f32 %v237, %v243
  %v248 = vmul.f32 %v238, %v243
  %v249 = vld [vmem:[%s4] sm:$0xff]
  %251 = vset.pattern.permute.xlu0 0
  %252 = vperm.xlu0 %251, %v249
  %v253 = vpop.permute.xlu0 %252
  %v255 = vadd.f32 %v245, %v253
  %v256 = vadd.f32 %v246, %v253
  %v257 = vadd.f32 %v247, %v253
  %v258 = vadd.f32 %v248, %v253
  %v259 = vmax.f32 %v255, 0.0
  %v260 = vmax.f32 %v256, 0.0
  %v261 = vmax.f32 %v257, 0.0
  %v262 = vmax.f32 %v258, 0.0
  %v263 = vld [vmem:[%s5] sm:$0xff]
  %v264 = vld [vmem:[%s5 + $0x8] sm:$0xff]
  %v265 = vld [vmem:[%s5 + $0x10] sm:$0xff]
  %v266 = vld [vmem:[%s5 + $0x18] sm:$0xff]
  %v267 = vadd.f32 %v259, %v263
  %v268 = vadd.f32 %v260, %v264
  %v269 = vadd.f32 %v261, %v265
  %v270 = vadd.f32 %v262, %v266
  %v271 = vmax.f32 %v267, %v268
  %v272 = vmax.f32 %v269, %v270
  %v273 = vmax.f32 %v271, %v272
  %274 = vst [vmem:[%s6] sm:$0xff] %v273
  // Predicated region
  $region26: #{res_net_forward.3} parent=0 // pred_check
    _
  $region27: #{res_net_forward.3} parent=0 // pred_check_branch
    %276 = sbr.rel (0) target = $region29
  $region28: #{res_net_forward.3} parent=0 // pred_region
    _
  $region29: #{res_net_forward.3} parent=0 // pred_fallthru
    _
  // Predicated region
  $region30: #{res_net_forward.3} parent=0 // pred_check
    _
  $region31: #{res_net_forward.3} parent=0 // pred_check_branch
    %278 = sbr.rel (0) target = $region33
  $region32: #{res_net_forward.3} parent=0 // pred_region
    _
  $region33: #{res_net_forward.3} parent=0 // pred_fallthru
    _

</llo_original>
